<compile_context>
chip_gen: v5e
topology: v5e:2x2
jax: 0.10.0
libtpu: 0.0.40
codegen_flags: <defaults>
</compile_context>

<pallas_src>
import jax
import jax.numpy as jnp
import numpy as np
from jax.experimental import pallas as pl
from jax.experimental.pallas import tpu as pltpu

# Problem sizes: x2 = randn(1, 1, 4, 16, 5); ConvTranspose3d(1, 1, 2, stride=2, output_padding=1)
D, H, W = 4, 16, 5
K = 2
OD, OH, OW = 2 * D + 1, 2 * H + 1, 2 * W + 1      # 9, 33, 11
HW = H * W                                        # 80   flattened input plane (lanes)
Q = OH * OW                                       # 363  flattened output plane (lanes)

# ---------------------------------------------------------------------------
# Constant index fields (data-independent), built once with numpy.
# ---------------------------------------------------------------------------
_oh = np.arange(Q) // OW                          # output height index per lane q
_ow = np.arange(Q) % OW                           # output width  index per lane q
_oh_src = _oh // 2                                # source h  (= oh // 2)
_ow_src = _ow // 2                                # source w  (= ow // 2)
_valid = (_oh_src < H) & (_ow_src < W)            # False on output_padding columns

# One-hot gather matrix E[p, q] = 1 iff (oh//2, ow//2) == (h, w); padding cols are zero.
_E_NP = np.zeros((HW, Q), np.float32)
_E_NP[(_oh_src * W + _ow_src)[_valid], np.arange(Q)[_valid]] = 1.0

# Parity one-hot P[j, q] = 1 iff 2*(oh%2) + (ow%2) == j.
_P_NP = np.zeros((K * K, Q), np.float32)
_P_NP[2 * (_oh % 2) + (_ow % 2), np.arange(Q)] = 1.0

# Per-output-row kd parity (od % 2); row od = 2D is output_padding (value irrelevant
# there because the corresponding LHS row is all-zero => gelu(bias)).
_OD_PARITY_NP = (np.arange(OD) % 2).astype(np.int32)


def _gelu_tanh(x4):
    # Exactly the elementwise chain from the PyTorch forward.
    v2 = x4 * 0.5
    v3 = x4 * x4 * x4
    v4 = v3 * 0.044715
    v5 = x4 + v4
    v6 = v5 * 0.7978845608028654
    v7 = jnp.tanh(v6)
    v8 = v7 + 1.0
    return v2 * v8


def deconv_gelu_kernel(lhs_ref, wrep_ref, e_ref, p_ref, b_ref, o_ref):
    # lhs_ref : (OD, H*W)   f32 VMEM  rows 2d / 2d+1 = x[d,:], last row zero
    # wrep_ref: (OD, 4)     f32 VMEM  row od = taps w[od%2, :, :] flattened (kh, kw)
    # e_ref   : (H*W, Q)    f32 VMEM  constant one-hot gather matrix
    # p_ref   : (4, Q)      f32 VMEM  constant (kh, kw)-parity one-hot
    # b_ref   : (1,)        f32 SMEM  deconv bias
    # o_ref   : (OD, Q)     f32 VMEM  rows = od, lanes = q = oh*OW + ow
    f32 = jnp.float32

    # Gathered input slab x_full[od, q] = x[od//2, oh//2, ow//2]  (0 on padding)
    x_full = jnp.dot(lhs_ref[...], e_ref[...], preferred_element_type=f32)   # (OD, Q)
    # Tap-weight field  w_full[od, q] = w[od%2, oh%2, ow%2]
    w_full = jnp.dot(wrep_ref[...], p_ref[...], preferred_element_type=f32)  # (OD, Q)

    # Fused deconv + tanh-GELU; padding positions reduce to gelu(0 * w + b) = gelu(b).
    o_ref[...] = _gelu_tanh(x_full * w_full + b_ref[0])


@jax.jit
def model_forward(x2, weight, bias):
    # x2: (1, 1, D, H, W); weight: (1, 1, 2, 2, 2) [in, out, kd, kh, kw]; bias: (1,)
    x2d = x2.reshape(D, H * W)                                   # row-major, free

    # LHS with the d -> od expansion folded in (row od = x[od//2], last row zero).
    lhs = jnp.concatenate(
        [jnp.repeat(x2d, 2, axis=0), jnp.zeros((1, HW), jnp.float32)], axis=0
    )                                                            # (OD, HW) ~3 KB

    # Per-output-row tap slice: wrep[od, :] = weight[0, 0, od % 2, :, :] flattened.
    w24 = weight.reshape(K, K * K)                               # (2, 4): rows = kd
    wrep = w24[jnp.asarray(_OD_PARITY_NP)]                       # (OD, 4)

    e_mat = jnp.asarray(_E_NP)                                   # (HW, Q) constant
    p_mat = jnp.asarray(_P_NP)                                   # (4,  Q) constant

    out_flat = pl.pallas_call(
        deconv_gelu_kernel,
        out_shape=jax.ShapeDtypeStruct((OD, Q), jnp.float32),
        in_specs=[
            pl.BlockSpec(memory_space=pltpu.MemorySpace.VMEM),   # lhs
            pl.BlockSpec(memory_space=pltpu.MemorySpace.VMEM),   # wrep
            pl.BlockSpec(memory_space=pltpu.MemorySpace.VMEM),   # e_mat
            pl.BlockSpec(memory_space=pltpu.MemorySpace.VMEM),   # p_mat
            pl.BlockSpec(memory_space=pltpu.MemorySpace.SMEM),   # bias
        ],
        out_specs=pl.BlockSpec(memory_space=pltpu.MemorySpace.VMEM),
    )(lhs, wrep, e_mat, p_mat, bias)

    # (OD, OH*OW) -> (1, 1, OD, OH, OW): row-major reshape, free bitcast.
    return out_flat.reshape(1, 1, OD, OH, OW)


def reference_forward(x2, weight, bias):
    # Independent reference: transposed conv == input-dilated conv with flipped kernel.
    w_f = weight[:, :, ::-1, ::-1, ::-1]
    rhs = jnp.transpose(w_f, (1, 0, 2, 3, 4))                    # OIDHW
    y = jax.lax.conv_general_dilated(
        x2, rhs,
        window_strides=(1, 1, 1),
        padding=((1, 2), (1, 2), (1, 2)),                        # (k-1, k-1+output_padding)
        lhs_dilation=(2, 2, 2),
        dimension_numbers=("NCDHW", "OIDHW", "NCDHW"),
    )
    x4 = y + bias.reshape(1, 1, 1, 1, 1)
    return _gelu_tanh(x4)


if __name__ == "__main__":
    key = jax.random.PRNGKey(0)
    kx, kw, kb = jax.random.split(key, 3)

    x2 = jax.random.normal(kx, (1, 1, D, H, W), dtype=jnp.float32)

    # Deterministic ConvTranspose3d(1, 1, 2) parameters (PyTorch-style uniform bound).
    fan = 1 * K * K * K
    bound = 1.0 / float(np.sqrt(fan))
    weight = jax.random.uniform(kw, (1, 1, K, K, K), jnp.float32, -bound, bound)
    bias = jax.random.uniform(kb, (1,), jnp.float32, -bound, bound)

    out = model_forward(x2, weight, bias)
    out = jax.block_until_ready(out)

    ref = reference_forward(x2, weight, bias)
    np.testing.assert_allclose(np.asarray(out), np.asarray(ref), rtol=1e-5, atol=1e-5)
    assert out.shape == (1, 1, OD, OH, OW)

    print("KERNEL_OK")
</pallas_src>

<mosaic_0001>
module attributes {stable_mosaic.version = 11 : i64} {
  func.func @deconv_gelu_kernel(%arg0: memref<9x80xf32, #tpu.memory_space<vmem>>, %arg1: memref<9x4xf32, #tpu.memory_space<vmem>>, %arg2: memref<80x363xf32, #tpu.memory_space<vmem>>, %arg3: memref<4x363xf32, #tpu.memory_space<vmem>>, %arg4: memref<1xf32, #tpu.memory_space<smem>>, %arg5: memref<9x363xf32, #tpu.memory_space<vmem>>) attributes {dimension_semantics = [], scalar_prefetch = 0 : i64, scratch_operands = 0 : i64, tpu.core_type = #tpu.core_type<tc>} {
    %c0 = arith.constant 0 : index
    %c0_0 = arith.constant 0 : index
    %0 = vector.load %arg0[%c0, %c0_0] : memref<9x80xf32, #tpu.memory_space<vmem>>, vector<9x80xf32>
    %c0_1 = arith.constant 0 : index
    %c0_2 = arith.constant 0 : index
    %1 = vector.load %arg2[%c0_1, %c0_2] : memref<80x363xf32, #tpu.memory_space<vmem>>, vector<80x363xf32>
    %cst = arith.constant dense<0.000000e+00> : vector<9x363xf32>
    %2 = tpu.matmul %0, %1, %cst {dimension_numbers = #tpu.dot_dimension_numbers<[1], [0], [0], [1], [0, 0, 1, 1], [], []>} : vector<9x80xf32>, vector<80x363xf32>, vector<9x363xf32> -> vector<9x363xf32>
    %c0_3 = arith.constant 0 : index
    %c0_4 = arith.constant 0 : index
    %3 = vector.load %arg1[%c0_3, %c0_4] : memref<9x4xf32, #tpu.memory_space<vmem>>, vector<9x4xf32>
    %c0_5 = arith.constant 0 : index
    %c0_6 = arith.constant 0 : index
    %4 = vector.load %arg3[%c0_5, %c0_6] : memref<4x363xf32, #tpu.memory_space<vmem>>, vector<4x363xf32>
    %cst_7 = arith.constant dense<0.000000e+00> : vector<9x363xf32>
    %5 = tpu.matmul %3, %4, %cst_7 {dimension_numbers = #tpu.dot_dimension_numbers<[1], [0], [0], [1], [0, 0, 1, 1], [], []>} : vector<9x4xf32>, vector<4x363xf32>, vector<9x363xf32> -> vector<9x363xf32>
    %6 = arith.mulf %2, %5 : vector<9x363xf32>
    %c0_8 = arith.constant 0 : index
    %7 = memref.load %arg4[%c0_8] : memref<1xf32, #tpu.memory_space<smem>>
    %8 = vector.broadcast %7 : f32 to vector<9x363xf32>
    %9 = arith.addf %6, %8 : vector<9x363xf32>
    %cst_9 = arith.constant 5.000000e-01 : f32
    %10 = vector.broadcast %cst_9 : f32 to vector<9x363xf32>
    %11 = arith.mulf %9, %10 : vector<9x363xf32>
    %12 = arith.mulf %9, %9 : vector<9x363xf32>
    %13 = arith.mulf %12, %9 : vector<9x363xf32>
    %cst_10 = arith.constant 4.471500e-02 : f32
    %14 = vector.broadcast %cst_10 : f32 to vector<9x363xf32>
    %15 = arith.mulf %13, %14 : vector<9x363xf32>
    %16 = arith.addf %9, %15 : vector<9x363xf32>
    %cst_11 = arith.constant 0.797884583 : f32
    %17 = vector.broadcast %cst_11 : f32 to vector<9x363xf32>
    %18 = arith.mulf %16, %17 : vector<9x363xf32>
    %19 = math.tanh %18 : vector<9x363xf32>
    %cst_12 = arith.constant 1.000000e+00 : f32
    %20 = vector.broadcast %cst_12 : f32 to vector<9x363xf32>
    %21 = arith.addf %19, %20 : vector<9x363xf32>
    %22 = arith.mulf %11, %21 : vector<9x363xf32>
    %c0_13 = arith.constant 0 : index
    %c0_14 = arith.constant 0 : index
    %23 = vector.load %arg5[%c0_13, %c0_14] : memref<9x363xf32, #tpu.memory_space<vmem>>, vector<9x363xf32>
    tpu.vector_store %arg5[%c0_13, %c0_14], %22 {strides = array<i32>} : memref<9x363xf32, #tpu.memory_space<vmem>>, vector<9x363xf32>,
    return
  }
}

</mosaic_0001>

<llo_original>
// kernel: model_forward.1
$region0: #{model_forward.1}
  #allocation0 [shape = 'u32[]', space=smem, size = 0x4, offset = 0x4, fixed_abs, tag = 'smem constant byte address 0x4 - core index']
  #allocation1 [shape = 'u32[72,128]{1,0:T(1,128)}', space=vmem, size = 0x9000, scoped, tag = 'internal scratch']
  #allocation2 [shape = 'f32[1]{0:T(128)S(6)}', space=smem, size = 0x200, scoped, tag = 'scoped memory for model_forward.1']
  %s0 = inlined_call_operand.vmem [shape: f32[9,80], index: 0, kind: input, shape index: {}]
  %s1 = inlined_call_operand.vmem [shape: f32[9,4], index: 1, kind: input, shape index: {}]
  %s2 = inlined_call_operand.vmem [shape: f32[80,363], index: 2, kind: input, shape index: {}]
  %s3 = inlined_call_operand.vmem [shape: f32[4,363], index: 3, kind: input, shape index: {}]
  %s4 = inlined_call_operand.<no memory space> [shape: f32[1], index: 4, kind: input, shape index: {}]
  %s5 = inlined_call_operand.vmem [shape: f32[9,363], index: 5, kind: output, shape index: {}]
  %s6 = sld [smem:[#allocation0]]
  $region30: #{model_forward.1} parent=0
    _
  %s8 = ssub.s32 1, %s6
  %s9 = scalar_select 0, %s8, %s6
  %10 = sst [smem:[#allocation2]] %s4
  // Predicated region
  $region2: #{model_forward.1} parent=0 // pred_check
    _
  $region3: #{model_forward.1} parent=0 // pred_check_branch
    %12 = sbr.rel (0) target = $region5
  $region4: #{model_forward.1} parent=0 // pred_region
    _
  $region5: #{model_forward.1} parent=0 // pred_fallthru
    _
  // Predicated region
  $region6: #{model_forward.1} parent=0 // pred_check
    _
  $region7: #{model_forward.1} parent=0 // pred_check_branch
    %14 = sbr.rel (0) target = $region9
  $region8: #{model_forward.1} parent=0 // pred_region
    _
  $region9: #{model_forward.1} parent=0 // pred_fallthru
    _
  // Predicated region
  $region10: #{model_forward.1} parent=0 // pred_check
    _
  $region11: #{model_forward.1} parent=0 // pred_check_branch
    %16 = sbr.rel (0) target = $region13
  $region12: #{model_forward.1} parent=0 // pred_region
    _
  $region13: #{model_forward.1} parent=0 // pred_fallthru
    _
  // Predicated region
  $region14: #{model_forward.1} parent=0 // pred_check
    _
  $region15: #{model_forward.1} parent=0 // pred_check_branch
    %18 = sbr.rel (0) target = $region17
  $region16: #{model_forward.1} parent=0 // pred_region
    _
  $region17: #{model_forward.1} parent=0 // pred_fallthru
    _
  // Predicated region
  $region18: #{model_forward.1} parent=0 // pred_check
    _
  $region19: #{model_forward.1} parent=0 // pred_check_branch
    %20 = sbr.rel (0) target = $region21
  $region20: #{model_forward.1} parent=0 // pred_region
    _
  $region21: #{model_forward.1} parent=0 // pred_fallthru
    _
  %v21 = vld [vmem:[%s0] sm:$0xff]
  %v22 = vld [vmem:[%s0 + $0x8] sm:$0x1]
  %v23 = vld [vmem:[%s2] sm:$0xff]
  %v24 = vld [vmem:[%s2 + $0x8] sm:$0xff]
  %v25 = vld [vmem:[%s2 + $0x10] sm:$0xff]
  %v26 = vld [vmem:[%s2 + $0x18] sm:$0xff]
  %v27 = vld [vmem:[%s2 + $0x20] sm:$0xff]
  %v28 = vld [vmem:[%s2 + $0x28] sm:$0xff]
  %v29 = vld [vmem:[%s2 + $0x30] sm:$0xff]
  %v30 = vld [vmem:[%s2 + $0x38] sm:$0xff]
  %v31 = vld [vmem:[%s2 + $0x40] sm:$0xff]
  %v32 = vld [vmem:[%s2 + $0x48] sm:$0xff]
  %v33 = vld [vmem:[%s2 + $0x50] sm:$0xff]
  %v34 = vld [vmem:[%s2 + $0x58] sm:$0xff]
  %v35 = vld [vmem:[%s2 + $0x60] sm:$0xff]
  %v36 = vld [vmem:[%s2 + $0x68] sm:$0xff]
  %v37 = vld [vmem:[%s2 + $0x70] sm:$0xff]
  %v38 = vld [vmem:[%s2 + $0x78] sm:$0xff]
  %v39 = vld [vmem:[%s2 + $0x80] sm:$0xff]
  %v40 = vld [vmem:[%s2 + $0x88] sm:$0xff]
  %v41 = vld [vmem:[%s2 + $0x90] sm:$0xff]
  %v42 = vld [vmem:[%s2 + $0x98] sm:$0xff]
  %v43 = vld [vmem:[%s2 + $0xa0] sm:$0xff]
  %v44 = vld [vmem:[%s2 + $0xa8] sm:$0xff]
  %v45 = vld [vmem:[%s2 + $0xb0] sm:$0xff]
  %v46 = vld [vmem:[%s2 + $0xb8] sm:$0xff]
  %v47 = vld [vmem:[%s2 + $0xc0] sm:$0xff]
  %v48 = vld [vmem:[%s2 + $0xc8] sm:$0xff]
  %v49 = vld [vmem:[%s2 + $0xd0] sm:$0xff]
  %v50 = vld [vmem:[%s2 + $0xd8] sm:$0xff]
  %v51 = vld [vmem:[%s2 + $0xe0] sm:$0xff]
  %v52 = vld [vmem:[%s2 + $0xe8] sm:$0xff]
  %vm53 = vcmask 654336
  %v55 = vsel %vm53, %v21, 0
  %v58 = vsel %vm53, %v22, 0
  %60 = vmatpush.msra.mxu0 0.0
  %61 = vmatpush.msra.mxu0 0.0
  %62 = vmatpush.msra.mxu0 0.0
  %63 = vmatpush.msra.mxu0 0.0
  %64 = vmatpush.msra.mxu0 0.0
  %65 = vmatpush.msra.mxu0 0.0
  %66 = vmatpush.msra.mxu0 %v50
  %67 = vmatpush.msra.mxu0 %v47
  %68 = vmatpush.msra.mxu0 %v44
  %69 = vmatpush.msra.mxu0 %v41
  %70 = vmatpush.msra.mxu0 %v38
  %71 = vmatpush.msra.mxu0 %v35
  %72 = vmatpush.msra.mxu0 %v32
  %73 = vmatpush.msra.mxu0 %v29
  %74 = vmatpush.msra.mxu0 %v26
  %75 = vmatpush.msra.mxu0 %v23
  %76 = vmatmul.f32.gmra.mxu0 %v55
  %v77 = vpop.f32.mrf.mxu0
  %v78 = vadd.f32 0.0, %v77
  %79 = vmatmul.f32.gmra.mxu0 %v58
  %v80 = vpop.f32.mrf.mxu0
  %v81 = vadd.f32 0.0, %v80
  %82 = vdwg.mxu0
  %83 = vmatpush.msra.mxu0 0.0
  %84 = vmatpush.msra.mxu0 0.0
  %85 = vmatpush.msra.mxu0 0.0
  %86 = vmatpush.msra.mxu0 0.0
  %87 = vmatpush.msra.mxu0 0.0
  %88 = vmatpush.msra.mxu0 0.0
  %89 = vmatpush.msra.mxu0 %v51
  %90 = vmatpush.msra.mxu0 %v48
  %91 = vmatpush.msra.mxu0 %v45
  %92 = vmatpush.msra.mxu0 %v42
  %93 = vmatpush.msra.mxu0 %v39
  %94 = vmatpush.msra.mxu0 %v36
  %95 = vmatpush.msra.mxu0 %v33
  %96 = vmatpush.msra.mxu0 %v30
  %97 = vmatpush.msra.mxu0 %v27
  %98 = vmatpush.msra.mxu0 %v24
  %99 = vmatmul.f32.gmra.mxu0 %v55
  %v100 = vpop.f32.mrf.mxu0
  %v101 = vadd.f32 0.0, %v100
  %102 = vmatmul.f32.gmra.mxu0 %v58
  %v103 = vpop.f32.mrf.mxu0
  %v104 = vadd.f32 0.0, %v103
  %105 = vdwg.mxu0
  %106 = vmatpush.msra.mxu0 0.0
  %107 = vmatpush.msra.mxu0 0.0
  %108 = vmatpush.msra.mxu0 0.0
  %109 = vmatpush.msra.mxu0 0.0
  %110 = vmatpush.msra.mxu0 0.0
  %111 = vmatpush.msra.mxu0 0.0
  %112 = vmatpush.msra.mxu0 %v52
  %113 = vmatpush.msra.mxu0 %v49
  %114 = vmatpush.msra.mxu0 %v46
  %115 = vmatpush.msra.mxu0 %v43
  %116 = vmatpush.msra.mxu0 %v40
  %117 = vmatpush.msra.mxu0 %v37
  %118 = vmatpush.msra.mxu0 %v34
  %119 = vmatpush.msra.mxu0 %v31
  %120 = vmatpush.msra.mxu0 %v28
  %121 = vmatpush.msra.mxu0 %v25
  %122 = vmatmul.f32.gmra.mxu0 %v55
  %v123 = vpop.f32.mrf.mxu0
  %v124 = vadd.f32 0.0, %v123
  %125 = vmatmul.f32.gmra.mxu0 %v58
  %v126 = vpop.f32.mrf.mxu0
  %v127 = vadd.f32 0.0, %v126
  %128 = vdwg.mxu0
  %v129 = vld [vmem:[%s1] sm:$0xff]
  %v130 = vld [vmem:[%s1 + $0x8] sm:$0x1]
  %v131 = vld [vmem:[%s3] sm:$0xff]
  %v132 = vld [vmem:[%s3 + $0x8] sm:$0xf]
  %135 = vst [vmem:[#allocation1] ss:$2 sm:$0xff] %v131
  %s136 = scalar_lea.vmem [#allocation1], 16
  %137 = vst [vmem:[%s136] ss:$2 sm:$0xff] %v132
  %v138 = vld.sshfl [vmem:[#allocation1] sm:$0xff pattern:$0x75316420]
  %v139 = vld.sshfl [vmem:[#allocation1 + $0x8] sm:$0xff pattern:$0x75316420]
  %v140 = vld.sshfl [vmem:[#allocation1 + $0x10] sm:$0xff pattern:$0x75316420]
  %vm141 = vcmask 31744
  %v143 = vsel %vm141, %v129, 0
  %v146 = vsel %vm141, %v130, 0
  %vm148 = vcmask 1043456
  %v149 = vsel %vm148, %v138, 0
  %v151 = vsel %vm148, %v139, 0
  %v153 = vsel %vm148, %v140, 0
  %155 = vmatpush.msra.mxu0 0.0
  %156 = vmatpush.msra.mxu0 0.0
  %157 = vmatpush.msra.mxu0 0.0
  %158 = vmatpush.msra.mxu0 0.0
  %159 = vmatpush.msra.mxu0 0.0
  %160 = vmatpush.msra.mxu0 0.0
  %161 = vmatpush.msra.mxu0 0.0
  %162 = vmatpush.msra.mxu0 0.0
  %163 = vmatpush.msra.mxu0 0.0
  %164 = vmatpush.msra.mxu0 0.0
  %165 = vmatpush.msra.mxu0 0.0
  %166 = vmatpush.msra.mxu0 0.0
  %167 = vmatpush.msra.mxu0 0.0
  %168 = vmatpush.msra.mxu0 0.0
  %169 = vmatpush.msra.mxu0 0.0
  %170 = vmatpush.msra.mxu0 %v149
  %171 = vmatmul.f32.gmra.mxu0 %v143
  %v172 = vpop.f32.mrf.mxu0
  %v173 = vadd.f32 0.0, %v172
  %174 = vmatmul.f32.gmra.mxu0 %v146
  %v175 = vpop.f32.mrf.mxu0
  %v176 = vadd.f32 0.0, %v175
  %177 = vdwg.mxu0
  %178 = vmatpush.msra.mxu0 0.0
  %179 = vmatpush.msra.mxu0 0.0
  %180 = vmatpush.msra.mxu0 0.0
  %181 = vmatpush.msra.mxu0 0.0
  %182 = vmatpush.msra.mxu0 0.0
  %183 = vmatpush.msra.mxu0 0.0
  %184 = vmatpush.msra.mxu0 0.0
  %185 = vmatpush.msra.mxu0 0.0
  %186 = vmatpush.msra.mxu0 0.0
  %187 = vmatpush.msra.mxu0 0.0
  %188 = vmatpush.msra.mxu0 0.0
  %189 = vmatpush.msra.mxu0 0.0
  %190 = vmatpush.msra.mxu0 0.0
  %191 = vmatpush.msra.mxu0 0.0
  %192 = vmatpush.msra.mxu0 0.0
  %193 = vmatpush.msra.mxu0 %v151
  %194 = vmatmul.f32.gmra.mxu0 %v143
  %v195 = vpop.f32.mrf.mxu0
  %v196 = vadd.f32 0.0, %v195
  %197 = vmatmul.f32.gmra.mxu0 %v146
  %v198 = vpop.f32.mrf.mxu0
  %v199 = vadd.f32 0.0, %v198
  %200 = vdwg.mxu0
  %201 = vmatpush.msra.mxu0 0.0
  %202 = vmatpush.msra.mxu0 0.0
  %203 = vmatpush.msra.mxu0 0.0
  %204 = vmatpush.msra.mxu0 0.0
  %205 = vmatpush.msra.mxu0 0.0
  %206 = vmatpush.msra.mxu0 0.0
  %207 = vmatpush.msra.mxu0 0.0
  %208 = vmatpush.msra.mxu0 0.0
  %209 = vmatpush.msra.mxu0 0.0
  %210 = vmatpush.msra.mxu0 0.0
  %211 = vmatpush.msra.mxu0 0.0
  %212 = vmatpush.msra.mxu0 0.0
  %213 = vmatpush.msra.mxu0 0.0
  %214 = vmatpush.msra.mxu0 0.0
  %215 = vmatpush.msra.mxu0 0.0
  %216 = vmatpush.msra.mxu0 %v153
  %217 = vmatmul.f32.gmra.mxu0 %v143
  %v218 = vpop.f32.mrf.mxu0
  %v219 = vadd.f32 0.0, %v218
  %220 = vmatmul.f32.gmra.mxu0 %v146
  %v221 = vpop.f32.mrf.mxu0
  %v222 = vadd.f32 0.0, %v221
  %223 = vdwg.mxu0
  %v224 = vmul.f32 %v78, %v173
  %v225 = vmul.f32 %v101, %v196
  %v226 = vmul.f32 %v124, %v219
  %v227 = vmul.f32 %v81, %v176
  %v228 = vmul.f32 %v104, %v199
  %v229 = vmul.f32 %v127, %v222
  %s230 = sld [smem:[#allocation2]]
  %v231 = vstv %s230
  %v232 = vadd.f32 %v224, %v231
  %v233 = vadd.f32 %v225, %v231
  %v234 = vadd.f32 %v226, %v231
  %v235 = vadd.f32 %v227, %v231
  %v236 = vadd.f32 %v228, %v231
  %v237 = vadd.f32 %v229, %v231
  %v238 = vmul.f32 %v232, 0.5
  %v239 = vmul.f32 %v233, 0.5
  %v240 = vmul.f32 %v234, 0.5
  %v241 = vmul.f32 %v235, 0.5
  %v242 = vmul.f32 %v236, 0.5
  %v243 = vmul.f32 %v237, 0.5
  %v244 = vmul.f32 %v232, %v232
  %v245 = vmul.f32 %v233, %v233
  %v246 = vmul.f32 %v234, %v234
  %v247 = vmul.f32 %v235, %v235
  %v248 = vmul.f32 %v236, %v236
  %v249 = vmul.f32 %v237, %v237
  %v250 = vmul.f32 %v244, %v232
  %v251 = vmul.f32 %v245, %v233
  %v252 = vmul.f32 %v246, %v234
  %v253 = vmul.f32 %v247, %v235
  %v254 = vmul.f32 %v248, %v236
  %v255 = vmul.f32 %v249, %v237
  %v256 = vmul.f32 %v250, 0.044715
  %v257 = vmul.f32 %v251, 0.044715
  %v258 = vmul.f32 %v252, 0.044715
  %v259 = vmul.f32 %v253, 0.044715
  %v260 = vmul.f32 %v254, 0.044715
  %v261 = vmul.f32 %v255, 0.044715
  %v262 = vadd.f32 %v232, %v256
  %v263 = vadd.f32 %v233, %v257
  %v264 = vadd.f32 %v234, %v258
  %v265 = vadd.f32 %v235, %v259
  %v266 = vadd.f32 %v236, %v260
  %v267 = vadd.f32 %v237, %v261
  %v268 = vmul.f32 %v262, 0.7978846
  %v269 = vmul.f32 %v263, 0.7978846
  %v270 = vmul.f32 %v264, 0.7978846
  %v271 = vmul.f32 %v265, 0.7978846
  %v272 = vmul.f32 %v266, 0.7978846
  %v273 = vmul.f32 %v267, 0.7978846
  %v274 = vtanh.pop %v268
  %v275 = vtanh.pop %v269
  %v276 = vtanh.pop %v270
  %v277 = vtanh.pop %v271
  %v278 = vtanh.pop %v272
  %v279 = vtanh.pop %v273
  %v280 = vadd.f32 %v274, 1.0
  %v281 = vadd.f32 %v275, 1.0
  %v282 = vadd.f32 %v276, 1.0
  %v283 = vadd.f32 %v277, 1.0
  %v284 = vadd.f32 %v278, 1.0
  %v285 = vadd.f32 %v279, 1.0
  %v286 = vmul.f32 %v238, %v280
  %v287 = vmul.f32 %v239, %v281
  %v288 = vmul.f32 %v240, %v282
  %v289 = vmul.f32 %v241, %v283
  %v290 = vmul.f32 %v242, %v284
  %v291 = vmul.f32 %v243, %v285
  %292 = vst [vmem:[%s5] sm:$0xff] %v286
  %293 = vst [vmem:[%s5 + $0x8] sm:$0xff] %v287
  %vm294 = vcmask 875520
  %295 = vst.msk [vmem:[%s5 + $0x10] sm:$0xff] %vm294, %v288
  %296 = vst [vmem:[%s5 + $0x18] sm:$0x1] %v289
  %297 = vst [vmem:[%s5 + $0x20] sm:$0x1] %v290
  %vm298 = vcmask 868352
  %299 = vst.msk [vmem:[%s5 + $0x28] sm:$0x1] %vm298, %v291
  // Predicated region
  $region22: #{model_forward.1} parent=0 // pred_check
    _
  $region23: #{model_forward.1} parent=0 // pred_check_branch
    %301 = sbr.rel (0) target = $region25
  $region24: #{model_forward.1} parent=0 // pred_region
    _
  $region25: #{model_forward.1} parent=0 // pred_fallthru
    _
  // Predicated region
  $region26: #{model_forward.1} parent=0 // pred_check
    _
  $region27: #{model_forward.1} parent=0 // pred_check_branch
    %303 = sbr.rel (0) target = $region29
  $region28: #{model_forward.1} parent=0 // pred_region
    _
  $region29: #{model_forward.1} parent=0 // pred_fallthru
    _

</llo_original>
